<compile_context>
chip_gen: v7x
topology: tpu7x:2x2x1
jax: 0.10.0
libtpu: 0.0.40
codegen_flags: <defaults>
</compile_context>

<pallas_src>
import functools

import jax
import jax.numpy as jnp
from jax import lax
from jax.experimental import pallas as pl
from jax.experimental.pallas import tpu as pltpu


def _round_up(n, m):
    return -(-n // m) * m


# ---------------------------------------------------------------------------
# Kernel
# ---------------------------------------------------------------------------
def _dgc_kernel(xc_ref, halo_ref, w_ref, b_ref, out_ref, *, TL, Dp, d):
    # xc_ref:   (1, TL, Dp)     center rows x[i*TL : (i+1)*TL] (also the residual)
    # halo_ref: (1, 1, 2d, Dp)  rows [i*TL-d, i*TL) and [(i+1)*TL, (i+1)*TL+d),
    #                           already zeroed at the sequence boundaries
    # w_ref:    (3, Dp, 2*Dp) bf16   per-tap fused [gate | value] weights
    # b_ref:    (1, 2*Dp) f32        fused conv bias
    center = xc_ref[0]                       # (TL, Dp) in the input dtype
    halo = halo_ref[0, 0]                    # (2d, Dp)
    res = center.astype(jnp.float32)
    center_bf = center.astype(jnp.bfloat16)  # middle tap: no shift copy needed

    # Shifted taps assembled from center + halo (sublane concats only).
    xs0 = jnp.concatenate([halo[:d], center[:TL - d]], axis=0).astype(jnp.bfloat16)
    xs2 = jnp.concatenate([center[d:], halo[d:]], axis=0).astype(jnp.bfloat16)

    # Three K=Dp matmuls accumulated in f32; N = 2*Dp (gate|value fused).
    acc = jnp.dot(center_bf, w_ref[1], preferred_element_type=jnp.float32)
    acc = acc + jnp.dot(xs0, w_ref[0], preferred_element_type=jnp.float32)
    acc = acc + jnp.dot(xs2, w_ref[2], preferred_element_type=jnp.float32)
    acc = acc + b_ref[...]

    g = acc[:, :Dp]                          # lane-tile aligned (Dp % 128 == 0)
    v = acc[:, Dp:]

    # TODO(synk): train-mode Dropout(p=0.1) on the gate logits omitted;
    # eval-mode (identity) semantics are implemented.
    x1 = pl.reciprocal(1.0 + jnp.exp(-g), approx=True)   # sigmoid (exp -> EUP recip)
    out_ref[0] = (res + x1 * (v - res)).astype(out_ref.dtype)  # res*(1-x1)+v*x1


# ---------------------------------------------------------------------------
# Tiling / VMEM budgeting (generation-aware)
# ---------------------------------------------------------------------------
def _vmem_capacity_bytes():
    try:
        info = pltpu.get_tpu_info()
        cap = int(getattr(info, "vmem_capacity_bytes", 0) or 0)
    except Exception:
        cap = 0
    return cap if cap >= (32 << 20) else (64 << 20)   # conservative fallback


def _step_vmem_bytes(tl, Dp, d, x_bytes):
    # double-buffered center / halo / out blocks + bf16 taps + f32 acc/res temps
    blocks = 2 * (tl * Dp + 2 * d * Dp + tl * Dp) * x_bytes
    temps = 40 * tl * Dp
    return blocks + temps


def _choose_seq_tile(L, Dp, d, x_bytes, budget, sub_mult, want_tiles=1):
    """Largest sublane-aligned tile whose per-step footprint fits the budget."""
    tl_min = _round_up(max(d + 1, sub_mult), sub_mult)
    per_row = 4 * Dp * x_bytes + 40 * Dp
    fixed = 4 * d * Dp * x_bytes
    tl_fit = max(tl_min, ((budget - fixed) // per_row // sub_mult) * sub_mult)
    tl = min(_round_up(L, sub_mult), tl_fit)
    if want_tiles > 1:                       # keep both v7x TensorCores busy
        tl = min(tl, max(tl_min, _round_up(pl.cdiv(L, want_tiles), sub_mult)))
    return max(tl, tl_min)


# ---------------------------------------------------------------------------
# Parameter re-layout (hoist out of the hot path; call once per module)
# ---------------------------------------------------------------------------
def prepare_params(weight, bias, compute_dtype=jnp.bfloat16):
    """weight: (2D, D, 3) PyTorch Conv1d layout; bias: (2D,).

    Returns (w, b): w (3, Dp, 2*Dp) per-tap fused [gate|value] weights,
    b (1, 2*Dp) fused bias, with Dp = D rounded up to a multiple of 128 so the
    in-kernel matmul / output stores are lane-dense.
    """
    two_d, D, K = weight.shape
    assert K == 3 and two_d == 2 * D
    Dp = _round_up(D, 128)
    wg = jnp.transpose(weight[:D], (2, 1, 0))       # (3, D_in, D_out) gate half
    wv = jnp.transpose(weight[D:], (2, 1, 0))       # (3, D_in, D_out) value half
    pad = ((0, 0), (0, Dp - D), (0, Dp - D))
    w = jnp.concatenate([jnp.pad(wg, pad), jnp.pad(wv, pad)], axis=2)
    w = w.astype(compute_dtype)                     # (3, Dp, 2*Dp)
    b = jnp.concatenate([jnp.pad(bias[:D], (0, Dp - D)),
                         jnp.pad(bias[D:], (0, Dp - D))])
    b = b.astype(jnp.float32).reshape(1, 2 * Dp)
    return w, b


# ---------------------------------------------------------------------------
# Wrapper
# ---------------------------------------------------------------------------
def dilated_gated_conv1d(x, w, b, dilation_rate, *, seq_tile=None):
    """x: (B, L, D); (w, b) from prepare_params(); returns (B, L, D)."""
    B, L, D = x.shape
    Dp = w.shape[1]
    assert w.shape == (3, Dp, 2 * Dp) and b.shape == (1, 2 * Dp) and Dp >= D
    d = int(dilation_rate)
    x_bytes = jnp.dtype(x.dtype).itemsize
    sub_mult = max(8, 32 // x_bytes)                 # 8 for f32, 16 bf16, 32 int8

    param_bytes = w.size * jnp.dtype(w.dtype).itemsize + b.size * 4
    vmem_cap = _vmem_capacity_bytes()
    # TODO(synk): for very large D the resident fused weights may not fit the
    # 64 MiB v7x VMEM; a K/N-tiled weight BlockSpec + accumulator would be
    # needed in that regime.
    act_budget = max(4 << 20, int(0.65 * vmem_cap) - param_bytes - (4 << 20))

    if seq_tile is None:
        TL = _choose_seq_tile(L, Dp, d, x_bytes, act_budget, sub_mult,
                              want_tiles=(2 if B == 1 else 1))
    else:
        TL = int(seq_tile)
    assert TL > d and TL % sub_mult == 0, (TL, d, sub_mult)

    nL = pl.cdiv(L, TL)
    Lp = nL * TL
    if Lp != L or Dp != D:
        # Zero pad reproduces the conv's boundary zeros; extra rows/cols sliced off.
        x_in = jnp.pad(x, ((0, 0), (0, Lp - L), (0, Dp - D)))
    else:
        x_in = x

    # Tiny halo tensor: for every sequence tile, the d rows before and after it
    # (zeros at the sequence boundaries).  ~2d/TL of x instead of a full pad.
    xr = x_in.reshape(B, nL, TL, Dp)
    zrow = jnp.zeros((B, 1, d, Dp), x.dtype)
    prev_h = jnp.concatenate([zrow, xr[:, :-1, TL - d:, :]], axis=1)   # (B,nL,d,Dp)
    next_h = jnp.concatenate([xr[:, 1:, :d, :], zrow], axis=1)         # (B,nL,d,Dp)
    halo = jnp.concatenate([prev_h, next_h], axis=2)                   # (B,nL,2d,Dp)

    act_need = _step_vmem_bytes(TL, Dp, d, x_bytes)
    vmem_limit = int(max(32 << 20,
                         min(int(0.92 * vmem_cap),
                             act_need + param_bytes + (8 << 20))))

    kernel = functools.partial(_dgc_kernel, TL=TL, Dp=Dp, d=d)
    resident = pl.BlockSpec(memory_space=pltpu.MemorySpace.VMEM)  # single-buffered
    out = pl.pallas_call(
        kernel,
        out_shape=jax.ShapeDtypeStruct((B, Lp, Dp), x.dtype),
        grid_spec=pltpu.PrefetchScalarGridSpec(
            num_scalar_prefetch=0,
            grid=(B, nL),
            in_specs=[
                pl.BlockSpec((1, TL, Dp), lambda bi, i: (bi, i, 0)),          # center
                pl.BlockSpec((1, 1, 2 * d, Dp), lambda bi, i: (bi, i, 0, 0)),  # halo
                resident,   # fused per-tap weights
                resident,   # fused bias
            ],
            out_specs=pl.BlockSpec((1, TL, Dp), lambda bi, i: (bi, i, 0)),
        ),
        compiler_params=pltpu.CompilerParams(
            dimension_semantics=("parallel", "parallel"),
            vmem_limit_bytes=vmem_limit,
        ),
    )(x_in, halo, w, b)
    return out[:, :L, :D]


# ---------------------------------------------------------------------------
# Pure-JAX reference (PyTorch eval-mode forward) for verification
# ---------------------------------------------------------------------------
def _reference(x, weight, bias, dilation_rate):
    d = int(dilation_rate)
    D = x.shape[-1]
    # Same bf16 rounding of the matmul inputs as the kernel (residual stays f32).
    xb = x.astype(jnp.bfloat16).astype(jnp.float32)
    wb = weight.astype(jnp.bfloat16).astype(jnp.float32)
    xc = jnp.transpose(xb, (0, 2, 1))                       # (B, D, L)
    y = lax.conv_general_dilated(
        xc, wb, window_strides=(1,), padding=[(d, d)],
        rhs_dilation=(d,), dimension_numbers=("NCH", "OIH", "NCH"))
    y = y + bias[None, :, None]
    y = jnp.transpose(y, (0, 2, 1))                         # (B, L, 2D)
    x1 = jax.nn.sigmoid(y[:, :, :D])
    x2 = y[:, :, D:]
    return x * (1 - x1) + x2 * x1


if __name__ == "__main__":
    B, L, D = 2, 16, 32
    dilation = 2
    key = jax.random.PRNGKey(0)
    kx, kw, kb = jax.random.split(key, 3)
    x = jax.random.normal(kx, (B, L, D), dtype=jnp.float32)
    # Conv1d(dim, 2*dim, kernel_size=3) params in PyTorch layout (out, in, k).
    fan_in = D * 3
    bound = 1.0 / (fan_in ** 0.5)
    weight = jax.random.uniform(kw, (2 * D, D, 3), minval=-bound, maxval=bound,
                                dtype=jnp.float32)
    bias = jax.random.uniform(kb, (2 * D,), minval=-bound, maxval=bound,
                              dtype=jnp.float32)

    # Hoisted, one-time weight re-layout (not in the per-call hot path).
    w, b = prepare_params(weight, bias)

    out = dilated_gated_conv1d(x, w, b, dilation)
    out = jax.block_until_ready(out)

    ref = _reference(x, weight, bias, dilation)
    err = float(jnp.max(jnp.abs(out - ref)))
    assert err < 2e-2, err
    print("KERNEL_OK")
</pallas_src>

<mosaic_0001>
module attributes {stable_mosaic.version = 11 : i64} {
  func.func @_dgc_kernel(%arg0: i32, %arg1: i32, %arg2: memref<1x16x128xf32, #tpu.memory_space<vmem>>, %arg3: memref<1x1x4x128xf32, #tpu.memory_space<vmem>>, %arg4: memref<3x128x256xbf16, #tpu.memory_space<vmem>>, %arg5: memref<1x256xf32, #tpu.memory_space<vmem>>, %arg6: memref<1x16x128xf32, #tpu.memory_space<vmem>>) attributes {dimension_semantics = [#tpu.dimension_semantics<parallel>, #tpu.dimension_semantics<parallel>], iteration_bounds = array<i64: 2, 1>, scalar_prefetch = 0 : i64, scratch_operands = 0 : i64, tpu.core_type = #tpu.core_type<tc>, window_params = [{transform_indices = @transform_0, window_bounds = array<i64: 1, 16, 128>}, {transform_indices = @transform_1, window_bounds = array<i64: 1, 1, 4, 128>}, {pipeline_mode = #tpu.pipeline_mode<synchronous>, transform_indices = @transform_2, window_bounds = array<i64: 3, 128, 256>}, {pipeline_mode = #tpu.pipeline_mode<synchronous>, transform_indices = @transform_3, window_bounds = array<i64: 1, 256>}, {transform_indices = @transform_4, window_bounds = array<i64: 1, 16, 128>}]} {
    %c0 = arith.constant 0 : index
    %c0_0 = arith.constant 0 : index
    %c0_1 = arith.constant 0 : index
    %0 = vector.load %arg2[%c0, %c0_0, %c0_1] : memref<1x16x128xf32, #tpu.memory_space<vmem>>, vector<1x16x128xf32>
    %1 = vector.shape_cast %0 : vector<1x16x128xf32> to vector<16x128xf32>
    %c0_2 = arith.constant 0 : index
    %c0_3 = arith.constant 0 : index
    %c0_4 = arith.constant 0 : index
    %c0_5 = arith.constant 0 : index
    %2 = vector.load %arg3[%c0_2, %c0_3, %c0_4, %c0_5] : memref<1x1x4x128xf32, #tpu.memory_space<vmem>>, vector<1x1x4x128xf32>
    %3 = vector.shape_cast %2 : vector<1x1x4x128xf32> to vector<4x128xf32>
    %4 = arith.truncf %1 : vector<16x128xf32> to vector<16x128xbf16>
    %5 = vector.extract_strided_slice %3 {offsets = [0, 0], sizes = [2, 128], strides = [1, 1]} : vector<4x128xf32> to vector<2x128xf32>
    %6 = vector.extract_strided_slice %1 {offsets = [0, 0], sizes = [14, 128], strides = [1, 1]} : vector<16x128xf32> to vector<14x128xf32>
    %7 = tpu.concatenate %5, %6 in 0 : vector<2x128xf32>, vector<14x128xf32> -> vector<16x128xf32>
    %8 = arith.truncf %7 : vector<16x128xf32> to vector<16x128xbf16>
    %9 = vector.extract_strided_slice %1 {offsets = [2, 0], sizes = [14, 128], strides = [1, 1]} : vector<16x128xf32> to vector<14x128xf32>
    %10 = vector.extract_strided_slice %3 {offsets = [2, 0], sizes = [2, 128], strides = [1, 1]} : vector<4x128xf32> to vector<2x128xf32>
    %11 = tpu.concatenate %9, %10 in 0 : vector<14x128xf32>, vector<2x128xf32> -> vector<16x128xf32>
    %12 = arith.truncf %11 : vector<16x128xf32> to vector<16x128xbf16>
    %c1 = arith.constant 1 : index
    %c0_6 = arith.constant 0 : index
    %c0_7 = arith.constant 0 : index
    %13 = vector.load %arg4[%c1, %c0_6, %c0_7] : memref<3x128x256xbf16, #tpu.memory_space<vmem>>, vector<1x128x256xbf16>
    %14 = vector.shape_cast %13 : vector<1x128x256xbf16> to vector<128x256xbf16>
    %cst = arith.constant dense<0.000000e+00> : vector<16x256xf32>
    %15 = tpu.matmul %4, %14, %cst {dimension_numbers = #tpu.dot_dimension_numbers<[1], [0], [0], [1], [0, 0, 1, 1], [], []>} : vector<16x128xbf16>, vector<128x256xbf16>, vector<16x256xf32> -> vector<16x256xf32>
    %c0_8 = arith.constant 0 : index
    %c0_9 = arith.constant 0 : index
    %c0_10 = arith.constant 0 : index
    %16 = vector.load %arg4[%c0_8, %c0_9, %c0_10] : memref<3x128x256xbf16, #tpu.memory_space<vmem>>, vector<1x128x256xbf16>
    %17 = vector.shape_cast %16 : vector<1x128x256xbf16> to vector<128x256xbf16>
    %cst_11 = arith.constant dense<0.000000e+00> : vector<16x256xf32>
    %18 = tpu.matmul %8, %17, %cst_11 {dimension_numbers = #tpu.dot_dimension_numbers<[1], [0], [0], [1], [0, 0, 1, 1], [], []>} : vector<16x128xbf16>, vector<128x256xbf16>, vector<16x256xf32> -> vector<16x256xf32>
    %19 = arith.addf %15, %18 : vector<16x256xf32>
    %c2 = arith.constant 2 : index
    %c0_12 = arith.constant 0 : index
    %c0_13 = arith.constant 0 : index
    %20 = vector.load %arg4[%c2, %c0_12, %c0_13] : memref<3x128x256xbf16, #tpu.memory_space<vmem>>, vector<1x128x256xbf16>
    %21 = vector.shape_cast %20 : vector<1x128x256xbf16> to vector<128x256xbf16>
    %cst_14 = arith.constant dense<0.000000e+00> : vector<16x256xf32>
    %22 = tpu.matmul %12, %21, %cst_14 {dimension_numbers = #tpu.dot_dimension_numbers<[1], [0], [0], [1], [0, 0, 1, 1], [], []>} : vector<16x128xbf16>, vector<128x256xbf16>, vector<16x256xf32> -> vector<16x256xf32>
    %23 = arith.addf %19, %22 : vector<16x256xf32>
    %c0_15 = arith.constant 0 : index
    %c0_16 = arith.constant 0 : index
    %24 = vector.load %arg5[%c0_15, %c0_16] : memref<1x256xf32, #tpu.memory_space<vmem>>, vector<1x256xf32>
    %25 = vector.broadcast %24 : vector<1x256xf32> to vector<16x256xf32>
    %26 = arith.addf %23, %25 : vector<16x256xf32>
    %27 = vector.extract_strided_slice %26 {offsets = [0, 0], sizes = [16, 128], strides = [1, 1]} : vector<16x256xf32> to vector<16x128xf32>
    %28 = vector.extract_strided_slice %26 {offsets = [0, 128], sizes = [16, 128], strides = [1, 1]} : vector<16x256xf32> to vector<16x128xf32>
    %cst_17 = arith.constant 0.000000e+00 : f32
    %29 = vector.broadcast %cst_17 : f32 to vector<16x128xf32>
    %30 = arith.subf %29, %27 : vector<16x128xf32>
    %31 = math.exp %30 : vector<16x128xf32>
    %cst_18 = arith.constant 1.000000e+00 : f32
    %32 = vector.broadcast %cst_18 : f32 to vector<16x128xf32>
    %33 = arith.addf %32, %31 : vector<16x128xf32>
    %34 = tpu.reciprocal %33 {approx = true} : vector<16x128xf32> -> vector<16x128xf32>
    %35 = arith.subf %28, %1 : vector<16x128xf32>
    %36 = arith.mulf %34, %35 : vector<16x128xf32>
    %37 = arith.addf %1, %36 : vector<16x128xf32>
    %c0_19 = arith.constant 0 : index
    %c0_20 = arith.constant 0 : index
    %c0_21 = arith.constant 0 : index
    %38 = vector.load %arg6[%c0_19, %c0_20, %c0_21] : memref<1x16x128xf32, #tpu.memory_space<vmem>>, vector<1x16x128xf32>
    %39 = vector.shape_cast %38 : vector<1x16x128xf32> to vector<16x128xf32>
    %40 = vector.shape_cast %37 : vector<16x128xf32> to vector<1x16x128xf32>
    tpu.vector_store %arg6[%c0_19, %c0_20, %c0_21], %40 {strides = array<i32>} : memref<1x16x128xf32, #tpu.memory_space<vmem>>, vector<1x16x128xf32>,
    return
  }
  func.func @transform_0(%arg0: i32, %arg1: i32) -> (i32, i32, i32) {
    %c0_i32 = arith.constant 0 : i32
    %c0_i32_0 = arith.constant 0 : i32
    return %arg0, %arg1, %c0_i32 : i32, i32, i32
  }
  func.func @transform_1(%arg0: i32, %arg1: i32) -> (i32, i32, i32, i32) {
    %c0_i32 = arith.constant 0 : i32
    %c0_i32_0 = arith.constant 0 : i32
    %c0_i32_1 = arith.constant 0 : i32
    return %arg0, %arg1, %c0_i32, %c0_i32_0 : i32, i32, i32, i32
  }
  func.func @transform_2(%arg0: i32, %arg1: i32) -> (i32, i32, i32) {
    %c0_i32 = arith.constant 0 : i32
    %c0_i32_0 = arith.constant 0 : i32
    %c0_i32_1 = arith.constant 0 : i32
    %c0_i32_2 = arith.constant 0 : i32
    return %c0_i32, %c0_i32_0, %c0_i32_1 : i32, i32, i32
  }
  func.func @transform_3(%arg0: i32, %arg1: i32) -> (i32, i32) {
    %c0_i32 = arith.constant 0 : i32
    %c0_i32_0 = arith.constant 0 : i32
    %c0_i32_1 = arith.constant 0 : i32
    return %c0_i32, %c0_i32_0 : i32, i32
  }
  func.func @transform_4(%arg0: i32, %arg1: i32) -> (i32, i32, i32) {
    %c0_i32 = arith.constant 0 : i32
    %c0_i32_0 = arith.constant 0 : i32
    return %arg0, %arg1, %c0_i32 : i32, i32, i32
  }
}

</mosaic_0001>

<llo_original>
// kernel: tpu_custom_call.1
$region0: #{tpu_custom_call.1}
  #allocation0 [shape = 'u32[]', space=smem, size = 0x4, offset = 0x4, fixed_abs, tag = 'smem constant byte address 0x4 - core index']
  #allocation1 [shape = 'u32[144,128]{1,0:T(1,128)}', space=vmem, size = 0x12000, scoped, tag = 'internal scratch']
  %s0 = inlined_call_operand.hbm [shape: f32[2,16,128], index: 0, kind: input, shape index: {}]
  %s1 = inlined_call_operand.hbm [shape: f32[2,1,4,128], index: 1, kind: input, shape index: {}]
  %s2 = inlined_call_operand.hbm [shape: bf16[3,128,256], index: 2, kind: input, shape index: {}]
  %s3 = inlined_call_operand.vmem [shape: f32[1,256], index: 3, kind: input, shape index: {}]
  %s4 = inlined_call_operand.hbm [shape: f32[2,16,128], index: 4, kind: output, shape index: {}]
  %s5 = sld [smem:[#allocation0]]
  $region61: #{tpu_custom_call.1} parent=0
    _
  %s7 = ssub.s32 1, %s5
  %s8 = scalar_select 0, %s7, %s5
  $region1: #{tpu_custom_call.1} parent=0
    #allocation2 [shape = 'u8[16384]{0}', space=vmem, size = 0x4000, scoped, tag = 'input window, operand 0']
    #allocation3 [shape = 's32[2]{0}', space=sflag, size = 0x8, scoped, tag = 'scoped memory for tpu_custom_call.1']
    #allocation4 [shape = 's32[2]{0}', space=sflag, size = 0x8, scoped, tag = 'scoped memory for tpu_custom_call.1']
    #allocation5 [shape = 'u8[4096]{0}', space=vmem, size = 0x1000, scoped, tag = 'input window, operand 1']
    #allocation6 [shape = 's32[2]{0}', space=sflag, size = 0x8, scoped, tag = 'scoped memory for tpu_custom_call.1']
    #allocation7 [shape = 'u8[196608]{0}', space=vmem, size = 0x30000, scoped, tag = 'input window, operand 2, single buffered']
    #allocation8 [shape = 'u8[16384]{0}', space=vmem, size = 0x4000, scoped, tag = 'output window, operand 0']
    %9 = vsyncpa [#allocation3], 0
    %s10 = scalar_lea.sflag [#allocation3], 1
    %11 = vsyncpa %s10, 0
    %12 = vsyncpa [#allocation6], 0
    %s13 = scalar_lea.sflag [#allocation6], 1
    %14 = vsyncpa %s13, 0
    %15 = vsyncpa [#allocation4], 0
    %s16 = scalar_lea.sflag [#allocation4], 1
    %17 = vsyncpa %s16, 0
    loop: start=0, step=1, limit=4
    $region2: #{tpu_custom_call.1} parent=1 // loop_pre_header
      _
    $region3: #{tpu_custom_call.1} parent=1 // loop_header
      %s19 = sphi 0, %s23
      %p20 = scmp.ge.s32.totalorder %s19, 4
      %s26 = sphi 0, %s38
      %s27 = sphi 0, %s34
      %s28 = sphi 0, %s26
      %s29 = sphi 0, %s27
      %s30 = sphi 0, %s28
      %s31 = sphi 0, %s29
      %s43 = sphi 0, %s45
      %s46 = sphi 0, %s43
      %s47 = sphi 0, %s46
      %s63 = sphi 0, %s47
      %s71 = sphi 0, %s73
      %s74 = sphi 0, %s71
      %s75 = sphi 0, %s74
      %s91 = sphi 0, %s75
      %s95 = sphi 0, %s95
      %s97 = sphi 0, %s95
      %s98 = sphi 0, %s97
      %s112 = sphi 0, %s98
      %s116 = sphi 0, %s116
      %s118 = sphi 0, %s116
      %s119 = sphi 0, %s118
      %s133 = sphi 0, %s119
      %s141 = sphi 0, %s143
      %s144 = sphi 0, %s141
      %s145 = sphi 0, %s144
      %s161 = sphi 0, %s145
    $region4: #{tpu_custom_call.1} parent=1 // loop_header_branch
      %22 = sbr.rel (%p20) target = $region8
    $region5: #{tpu_custom_call.1} parent=1 // loop_body
      %s24 = ssub.s32 %s19, 1
      %s25 = ssub.s32 %s19, 2
      %s32 = sadd.s32 1, %s27
      %p33 = scmp.ge.s32.totalorder %s32, 1
      %s34 = scalar_select %p33, 0, %s32
      %s35 = sadd.s32 1, %s26
      %s36 = scalar_select %p33, %s35, %s26
      %p37 = scmp.ge.s32.totalorder %s36, 2
      %s38 = scalar_select %p37, 0, %s36
      %s39 = ssub.s32 %s26, %s38
      %s40 = ssub.s32 %s27, %s34
      %s41 = sor.u32 %s39, %s40
      %p42 = scmp.eq.s32.totalorder %s41, 0
      %s44 = sadd.s32 %s43, 1
      %s45 = scalar_select %p42, %s43, %s44
      %p48 = pneg %p42
      %p49 = scmp.eq.s32.totalorder %s19, 1
      %p50 = por %p48, %p49
      %p51 = scmp.ne.s32.totalorder %s43, %s46
      %p52 = scmp.eq.s32.totalorder %s19, 0
      %p53 = por %p51, %p52
      %p54 = scmp.ne.s32.totalorder %s43, %s46
      %p55 = scmp.eq.s32.totalorder %s24, 1
      %p56 = por %p54, %p55
      %p57 = scmp.ne.s32.totalorder %s46, %s47
      %p58 = scmp.eq.s32.totalorder %s24, 0
      %p59 = por %p57, %p58
      %p60 = scmp.ne.s32.totalorder %s46, %s47
      %p61 = scmp.eq.s32.totalorder %s25, 1
      %p62 = por %p60, %p61
      %p64 = scmp.ne.s32.totalorder %s47, %s63
      %p65 = scmp.eq.s32.totalorder %s25, 0
      %p66 = por %p64, %p65
      %s67 = ssub.s32 %s26, %s38
      %s68 = ssub.s32 %s27, %s34
      %s69 = sor.u32 %s67, %s68
      %p70 = scmp.eq.s32.totalorder %s69, 0
      %s72 = sadd.s32 %s71, 1
      %s73 = scalar_select %p70, %s71, %s72
      %p76 = pneg %p70
      %p77 = scmp.eq.s32.totalorder %s19, 1
      %p78 = por %p76, %p77
      %p79 = scmp.ne.s32.totalorder %s71, %s74
      %p80 = scmp.eq.s32.totalorder %s19, 0
      %p81 = por %p79, %p80
      %p82 = scmp.ne.s32.totalorder %s71, %s74
      %p83 = scmp.eq.s32.totalorder %s24, 1
      %p84 = por %p82, %p83
      %p85 = scmp.ne.s32.totalorder %s74, %s75
      %p86 = scmp.eq.s32.totalorder %s24, 0
      %p87 = por %p85, %p86
      %p88 = scmp.ne.s32.totalorder %s74, %s75
      %p89 = scmp.eq.s32.totalorder %s25, 1
      %p90 = por %p88, %p89
      %p92 = scmp.ne.s32.totalorder %s75, %s91
      %p93 = scmp.eq.s32.totalorder %s25, 0
      %p94 = por %p92, %p93
      %s96 = sadd.s32 %s95, 1
      %p99 = scmp.eq.s32.totalorder %s19, 1
      %p100 = scmp.ne.s32.totalorder %s95, %s97
      %p101 = scmp.eq.s32.totalorder %s19, 0
      %p102 = por %p100, %p101
      %p103 = scmp.ne.s32.totalorder %s95, %s97
      %p104 = scmp.eq.s32.totalorder %s24, 1
      %p105 = por %p103, %p104
      %p106 = scmp.ne.s32.totalorder %s97, %s98
      %p107 = scmp.eq.s32.totalorder %s24, 0
      %p108 = por %p106, %p107
      %p109 = scmp.ne.s32.totalorder %s97, %s98
      %p110 = scmp.eq.s32.totalorder %s25, 1
      %p111 = por %p109, %p110
      %p113 = scmp.ne.s32.totalorder %s98, %s112
      %p114 = scmp.eq.s32.totalorder %s25, 0
      %p115 = por %p113, %p114
      %s117 = sadd.s32 %s116, 1
      %p120 = scmp.eq.s32.totalorder %s19, 1
      %p121 = scmp.ne.s32.totalorder %s116, %s118
      %p122 = scmp.eq.s32.totalorder %s19, 0
      %p123 = por %p121, %p122
      %p124 = scmp.ne.s32.totalorder %s116, %s118
      %p125 = scmp.eq.s32.totalorder %s24, 1
      %p126 = por %p124, %p125
      %p127 = scmp.ne.s32.totalorder %s118, %s119
      %p128 = scmp.eq.s32.totalorder %s24, 0
      %p129 = por %p127, %p128
      %p130 = scmp.ne.s32.totalorder %s118, %s119
      %p131 = scmp.eq.s32.totalorder %s25, 1
      %p132 = por %p130, %p131
      %p134 = scmp.ne.s32.totalorder %s119, %s133
      %p135 = scmp.eq.s32.totalorder %s25, 0
      %p136 = por %p134, %p135
      %s137 = ssub.s32 %s26, %s38
      %s138 = ssub.s32 %s27, %s34
      %s139 = sor.u32 %s137, %s138
      %p140 = scmp.eq.s32.totalorder %s139, 0
      %s142 = sadd.s32 %s141, 1
      %s143 = scalar_select %p140, %s141, %s142
      %p146 = pneg %p140
      %p147 = scmp.eq.s32.totalorder %s19, 1
      %p148 = por %p146, %p147
      %p149 = scmp.ne.s32.totalorder %s141, %s144
      %p150 = scmp.eq.s32.totalorder %s19, 0
      %p151 = por %p149, %p150
      %p152 = scmp.ne.s32.totalorder %s141, %s144
      %p153 = scmp.eq.s32.totalorder %s24, 1
      %p154 = por %p152, %p153
      %p155 = scmp.ne.s32.totalorder %s144, %s145
      %p156 = scmp.eq.s32.totalorder %s24, 0
      %p157 = por %p155, %p156
      %p158 = scmp.ne.s32.totalorder %s144, %s145
      %p159 = scmp.eq.s32.totalorder %s25, 1
      %p160 = por %p158, %p159
      %p162 = scmp.ne.s32.totalorder %s145, %s161
      %p163 = scmp.eq.s32.totalorder %s25, 0
      %p164 = por %p162, %p163
      %p165 = scmp.le.s32.totalorder 1, %s19
      %p166 = scmp.lt.s32.totalorder %s19, 3
      %p167 = pnand %p165, %p166
      %p168 = pneg %p167
      // Predicated region
      $region9: #{tpu_custom_call.1} parent=5 // pred_check
        _
      $region10: #{tpu_custom_call.1} parent=5 // pred_check_branch
        %170 = sbr.rel (%p167) target = $region12
      $region11: #{tpu_custom_call.1} parent=5 // pred_region
        %s171 = ssub.s32 %s19, 1
        // Predicated region
        $region13: #{tpu_custom_call.1} parent=11 // pred_check
          %p172 = pneg %p108
        $region14: #{tpu_custom_call.1} parent=11 // pred_check_branch
          %174 = sbr.rel (%p172) target = $region16
        $region15: #{tpu_custom_call.1} parent=11 // pred_region
          %s176 = ssub.s32 6144, 6144
          %177 = vsyncadd [#allocation6], %s176
          %s178 = sshll.u32 [#allocation7], 4
          %s179 = int_to_ptr.vmem [resolvable:$true] %s178
          %184 = dma.hbm_to_vmem [thread:$0]  %s2, 6144, %s179, [#allocation6], 128, 128, 8
        $region16: #{tpu_custom_call.1} parent=11 // pred_fallthru
          _
        // Predicated region
        $region17: #{tpu_custom_call.1} parent=11 // pred_check
          %p185 = pneg %p129
        $region18: #{tpu_custom_call.1} parent=11 // pred_check_branch
          %187 = sbr.rel (%p185) target = $region20
        $region19: #{tpu_custom_call.1} parent=11 // pred_region
          _
        $region20: #{tpu_custom_call.1} parent=11 // pred_fallthru
          _
      $region12: #{tpu_custom_call.1} parent=5 // pred_fallthru
        _
      %p188 = scmp.lt.s32.totalorder %s19, 2
      // Predicated region
      $region21: #{tpu_custom_call.1} parent=5 // pred_check
        %p189 = pneg %p188
      $region22: #{tpu_custom_call.1} parent=5 // pred_check_branch
        %191 = sbr.rel (%p189) target = $region24
      $region23: #{tpu_custom_call.1} parent=5 // pred_region
        // Predicated region
        $region25: #{tpu_custom_call.1} parent=23 // pred_check
          %p192 = pneg %p53
        $region26: #{tpu_custom_call.1} parent=23 // pred_check_branch
          %194 = sbr.rel (%p192) target = $region28
        $region27: #{tpu_custom_call.1} parent=23 // pred_region
          %s195 = sand.u32 %s43, 1
          %s196 = scalar_lea.sflag [#allocation3], %s195
          %s197 = sand.u32 %s43, 1
          %s198 = smul.addr %s197, 16
          %s199 = scalar_lea.vmem [#allocation2], %s198
          %s200 = smul.u32 2, %s27
          %s202 = ssub.s32 256, 256
          %203 = vsyncadd %s196, %s202
          %s204 = smul.addr %s26, 2
          %s205 = sadd.s32 %s200, %s204
          %s206 = smul.addr %s205, 128
          %s207 = scalar_lea.hbm %s0, %s206
          %s208 = sshll.u32 %s199, 4
          %s209 = int_to_ptr.vmem [resolvable:$true] %s208
          %214 = dma.hbm_to_vmem [thread:$0]  %s207, 256, %s209, %s196, 128, 128, 8
        $region28: #{tpu_custom_call.1} parent=23 // pred_fallthru
          _
        // Predicated region
        $region29: #{tpu_custom_call.1} parent=23 // pred_check
          %p215 = pneg %p81
        $region30: #{tpu_custom_call.1} parent=23 // pred_check_branch
          %217 = sbr.rel (%p215) target = $region32
        $region31: #{tpu_custom_call.1} parent=23 // pred_region
          %s218 = sand.u32 %s19, 1
          %s219 = scalar_lea.sflag [#allocation6], %s218
          %s220 = sand.u32 %s71, 1
          %s221 = smul.addr %s220, 4
          %s222 = scalar_lea.vmem [#allocation5], %s221
          %s224 = ssub.s32 64, 64
          %225 = vsyncadd %s219, %s224
          %s226 = sadd.s32 %s27, %s26
          %s227 = smul.addr %s226, 64
          %s228 = scalar_lea.hbm %s1, %s227
          %s230 = sshll.u32 %s222, 4
          %s231 = int_to_ptr.vmem [resolvable:$true] %s230
          %233 = dma.hbm_to_vmem [thread:$0]  %s228, 64, %s231, %s219
        $region32: #{tpu_custom_call.1} parent=23 // pred_fallthru
          _
      $region24: #{tpu_custom_call.1} parent=5 // pred_fallthru
        _
      %p234 = scmp.le.s32.totalorder 1, %s19
      %p235 = scmp.lt.s32.totalorder %s19, 3
      %p236 = pnand %p234, %p235
      %p237 = pneg %p236
      // Predicated region
      $region33: #{tpu_custom_call.1} parent=5 // pred_check
        _
      $region34: #{tpu_custom_call.1} parent=5 // pred_check_branch
        %239 = sbr.rel (%p236) target = $region36
      $region35: #{tpu_custom_call.1} parent=5 // pred_region
        %s240 = ssub.s32 %s19, 1
        %s241 = sand.u32 %s46, 1
        %s242 = scalar_lea.sflag [#allocation3], %s241
        %s243 = sand.u32 %s46, 1
        %s244 = smul.addr %s243, 16
        %s245 = scalar_lea.vmem [#allocation2], %s244
        // Predicated region
        $region37: #{tpu_custom_call.1} parent=35 // pred_check
          %p246 = pneg %p59
        $region38: #{tpu_custom_call.1} parent=35 // pred_check_branch
          %248 = sbr.rel (%p246) target = $region40
        $region39: #{tpu_custom_call.1} parent=35 // pred_region
          %249 = dma.done %s242, 256
        $region40: #{tpu_custom_call.1} parent=35 // pred_fallthru
          _
        %s250 = sand.u32 %s24, 1
        %s251 = scalar_lea.sflag [#allocation6], %s250
        %s252 = sand.u32 %s74, 1
        %s253 = smul.addr %s252, 4
        %s254 = scalar_lea.vmem [#allocation5], %s253
        // Predicated region
        $region41: #{tpu_custom_call.1} parent=35 // pred_check
          %p255 = pneg %p87
        $region42: #{tpu_custom_call.1} parent=35 // pred_check_branch
          %257 = sbr.rel (%p255) target = $region44
        $region43: #{tpu_custom_call.1} parent=35 // pred_region
          %258 = dma.done %s251, 64
        $region44: #{tpu_custom_call.1} parent=35 // pred_fallthru
          _
        // Predicated region
        $region45: #{tpu_custom_call.1} parent=35 // pred_check
          %p259 = pneg %p108
        $region46: #{tpu_custom_call.1} parent=35 // pred_check_branch
          %261 = sbr.rel (%p259) target = $region48
        $region47: #{tpu_custom_call.1} parent=35 // pred_region
          %262 = dma.done [#allocation6], 6144
        $region48: #{tpu_custom_call.1} parent=35 // pred_fallthru
          _
        %s263 = sand.u32 %s46, 1
        %s264 = scalar_lea.sflag [#allocation3], %s263
        %s265 = sand.u32 %s46, 1
        %s266 = smul.addr %s265, 16
        %s267 = scalar_lea.vmem [#allocation2], %s266
        %p268 = pneg %p59
        %p269 = pneg %p56
        %s270 = sand.u32 %s24, 1
        %s271 = scalar_lea.sflag [#allocation6], %s270
        %s272 = sand.u32 %s74, 1
        %s273 = smul.addr %s272, 4
        %s274 = scalar_lea.vmem [#allocation5], %s273
        %p275 = pneg %p87
        %p276 = pneg %p84
        %p277 = pneg %p108
        %p278 = pneg %p105
        %p279 = pneg %p129
        %p280 = pneg %p126
        %p281 = pneg %p157
        %p282 = pneg %p154
        %s283 = sand.u32 %s144, 1
        %s284 = scalar_lea.sflag [#allocation4], %s283
        %s285 = sand.u32 %s144, 1
        %s286 = smul.addr %s285, 16
        %s287 = scalar_lea.vmem [#allocation8], %s286
        %s288 = smul.u32 2, %s29
        %s289 = smul.u32 2, %s29
        %v291 = vld [vmem:[%s245] sm:$0xff]
        %v292 = vld [vmem:[%s245 + $0x8] sm:$0xff]
        %v293 = vld [vmem:[%s254] sm:$0xf]
        %v294 = vpack.c.bf16 %v292, %v291
        %vm297 = vcmask 1041408
        %v298 = vrot.slane %v291, 6
        %v299 = vrot.slane %v292, 6
        %v300 = vsel %vm297, %v298, %v299
        %v303 = vsel %vm297, %v293, %v298
        %v304 = vpack.c.bf16 %v300, %v303
        %vm305 = vcmask 1045504
        %v306 = vrot.slane %v291, 2
        %v307 = vrot.slane %v292, 2
        %v308 = vsel %vm305, %v306, %v307
        %v312 = vrot.slane %v293, 4
        %v314 = vsel %vm305, %v307, %v312
        %v315 = vpack.c.bf16 %v314, %v308
        %s316 = scalar_lea.vmem [#allocation7], 128
        %v317 = vld [vmem:[%s316] sm:$0xff]
        %v318 = vld [vmem:[%s316 + $0x8] sm:$0xff]
        %v319 = vld [vmem:[%s316 + $0x10] sm:$0xff]
        %v320 = vld [vmem:[%s316 + $0x18] sm:$0xff]
        %v321 = vld [vmem:[%s316 + $0x20] sm:$0xff]
        %v322 = vld [vmem:[%s316 + $0x28] sm:$0xff]
        %v323 = vld [vmem:[%s316 + $0x30] sm:$0xff]
        %v324 = vld [vmem:[%s316 + $0x38] sm:$0xff]
        %v325 = vld [vmem:[%s316 + $0x40] sm:$0xff]
        %v326 = vld [vmem:[%s316 + $0x48] sm:$0xff]
        %v327 = vld [vmem:[%s316 + $0x50] sm:$0xff]
        %v328 = vld [vmem:[%s316 + $0x58] sm:$0xff]
        %v329 = vld [vmem:[%s316 + $0x60] sm:$0xff]
        %v330 = vld [vmem:[%s316 + $0x68] sm:$0xff]
        %v331 = vld [vmem:[%s316 + $0x70] sm:$0xff]
        %v332 = vld [vmem:[%s316 + $0x78] sm:$0xff]
        %v333 = vld [vmem:[#allocation7] sm:$0xff]
        %v334 = vld [vmem:[#allocation7 + $0x8] sm:$0xff]
        %v335 = vld [vmem:[#allocation7 + $0x10] sm:$0xff]
        %v336 = vld [vmem:[#allocation7 + $0x18] sm:$0xff]
        %v337 = vld [vmem:[#allocation7 + $0x20] sm:$0xff]
        %v338 = vld [vmem:[#allocation7 + $0x28] sm:$0xff]
        %v339 = vld [vmem:[#allocation7 + $0x30] sm:$0xff]
        %v340 = vld [vmem:[#allocation7 + $0x38] sm:$0xff]
        %v341 = vld [vmem:[#allocation7 + $0x40] sm:$0xff]
        %v342 = vld [vmem:[#allocation7 + $0x48] sm:$0xff]
        %v343 = vld [vmem:[#allocation7 + $0x50] sm:$0xff]
        %v344 = vld [vmem:[#allocation7 + $0x58] sm:$0xff]
        %v345 = vld [vmem:[#allocation7 + $0x60] sm:$0xff]
        %v346 = vld [vmem:[#allocation7 + $0x68] sm:$0xff]
        %v347 = vld [vmem:[#allocation7 + $0x70] sm:$0xff]
        %v348 = vld [vmem:[#allocation7 + $0x78] sm:$0xff]
        %v365 = vunpack.c.l.b16 %v333
        %v366 = vunpack.c.h.b16 %v333
        %v367 = vunpack.c.l.b16 %v334
        %v368 = vunpack.c.h.b16 %v334
        %v369 = vunpack.c.l.b16 %v335
        %v370 = vunpack.c.h.b16 %v335
        %v371 = vunpack.c.l.b16 %v336
        %v372 = vunpack.c.h.b16 %v336
        %v373 = vunpack.c.l.b16 %v337
        %v374 = vunpack.c.h.b16 %v337
        %v375 = vunpack.c.l.b16 %v338
        %v376 = vunpack.c.h.b16 %v338
        %v377 = vunpack.c.l.b16 %v339
        %v378 = vunpack.c.h.b16 %v339
        %v379 = vunpack.c.l.b16 %v340
        %v380 = vunpack.c.h.b16 %v340
        %v381 = vunpack.c.l.b16 %v341
        %v382 = vunpack.c.h.b16 %v341
        %v383 = vunpack.c.l.b16 %v342
        %v384 = vunpack.c.h.b16 %v342
        %v385 = vunpack.c.l.b16 %v343
        %v386 = vunpack.c.h.b16 %v343
        %v387 = vunpack.c.l.b16 %v344
        %v388 = vunpack.c.h.b16 %v344
        %v389 = vunpack.c.l.b16 %v345
        %v390 = vunpack.c.h.b16 %v345
        %v391 = vunpack.c.l.b16 %v346
        %v392 = vunpack.c.h.b16 %v346
        %v393 = vunpack.c.l.b16 %v347
        %v394 = vunpack.c.h.b16 %v347
        %v395 = vunpack.c.l.b16 %v348
        %v396 = vunpack.c.h.b16 %v348
        %v397 = vpack.c.b16 %v367, %v365
        %v398 = vpack.c.b16 %v368, %v366
        %v399 = vpack.c.b16 %v371, %v369
        %v400 = vpack.c.b16 %v372, %v370
        %v401 = vpack.c.b16 %v375, %v373
        %v402 = vpack.c.b16 %v376, %v374
        %v403 = vpack.c.b16 %v379, %v377
        %v404 = vpack.c.b16 %v380, %v378
        %v405 = vpack.c.b16 %v383, %v381
        %v406 = vpack.c.b16 %v384, %v382
        %v407 = vpack.c.b16 %v387, %v385
        %v408 = vpack.c.b16 %v388, %v386
        %v409 = vpack.c.b16 %v391, %v389
        %v410 = vpack.c.b16 %v392, %v390
        %v411 = vpack.c.b16 %v395, %v393
        %v412 = vpack.c.b16 %v396, %v394
        %429 = vmatprep.subr.bf16.mxu0 %v398
        %430 = vmatpush1.bf16.msra.mxu0 %v397
        %431 = vmatprep.subr.bf16.mxu0 %v400
        %432 = vmatpush1.bf16.msra.mxu0 %v399
        %433 = vmatprep.subr.bf16.mxu0 %v402
        %434 = vmatpush1.bf16.msra.mxu0 %v401
        %435 = vmatprep.subr.bf16.mxu0 %v404
        %436 = vmatpush1.bf16.msra.mxu0 %v403
        %437 = vmatprep.subr.bf16.mxu0 %v406
        %438 = vmatpush1.bf16.msra.mxu0 %v405
        %439 = vmatprep.subr.bf16.mxu0 %v408
        %440 = vmatpush1.bf16.msra.mxu0 %v407
        %441 = vmatprep.subr.bf16.mxu0 %v410
        %442 = vmatpush1.bf16.msra.mxu0 %v409
        %443 = vmatprep.subr.bf16.mxu0 %v412
        %444 = vmatpush1.bf16.msra.mxu0 %v411
        %445 = vmatprep.subr.bf16.mxu0 0
        %446 = vmatpush1.bf16.msra.mxu0 0
        %447 = vmatprep.subr.bf16.mxu0 0
        %448 = vmatpush1.bf16.msra.mxu0 0
        %449 = vmatprep.subr.bf16.mxu0 0
        %450 = vmatpush1.bf16.msra.mxu0 0
        %451 = vmatprep.subr.bf16.mxu0 0
        %452 = vmatpush1.bf16.msra.mxu0 0
        %453 = vmatprep.subr.bf16.mxu0 0
        %454 = vmatpush1.bf16.msra.mxu0 0
        %455 = vmatprep.subr.bf16.mxu0 0
        %456 = vmatpush1.bf16.msra.mxu0 0
        %457 = vmatprep.subr.bf16.mxu0 0
        %458 = vmatpush1.bf16.msra.mxu0 0
        %459 = vmatprep.subr.bf16.mxu0 0
        %460 = vmatpush1.bf16.msra.mxu0 0
        %461 = vmatprep.mubr.bf16.mxu0 0
        %462 = vmatmul.mubr.bf16.gmra.mrb[0].mxu0 %v304
        %v463 = vpop.f32.mrb[0].mxu0
        %v464 = vadd.f32 0.0, %v463
        %v465 = vpop.f32.mrb[0].mxu0
        %v466 = vadd.f32 0.0, %v465
        %v467 = vpop.f32.mrb[0].mxu0
        %v468 = vadd.f32 0.0, %v467
        %v469 = vpop.f32.mrb[0].mxu0
        %v470 = vadd.f32 0.0, %v469
        %471 = vdwg.mxu0
        %v488 = vunpack.c.l.b16 %v317
        %v489 = vunpack.c.h.b16 %v317
        %v490 = vunpack.c.l.b16 %v318
        %v491 = vunpack.c.h.b16 %v318
        %v492 = vunpack.c.l.b16 %v319
        %v493 = vunpack.c.h.b16 %v319
        %v494 = vunpack.c.l.b16 %v320
        %v495 = vunpack.c.h.b16 %v320
        %v496 = vunpack.c.l.b16 %v321
        %v497 = vunpack.c.h.b16 %v321
        %v498 = vunpack.c.l.b16 %v322
        %v499 = vunpack.c.h.b16 %v322
        %v500 = vunpack.c.l.b16 %v323
        %v501 = vunpack.c.h.b16 %v323
        %v502 = vunpack.c.l.b16 %v324
        %v503 = vunpack.c.h.b16 %v324
        %v504 = vunpack.c.l.b16 %v325
        %v505 = vunpack.c.h.b16 %v325
        %v506 = vunpack.c.l.b16 %v326
        %v507 = vunpack.c.h.b16 %v326
        %v508 = vunpack.c.l.b16 %v327
        %v509 = vunpack.c.h.b16 %v327
        %v510 = vunpack.c.l.b16 %v328
        %v511 = vunpack.c.h.b16 %v328
        %v512 = vunpack.c.l.b16 %v329
        %v513 = vunpack.c.h.b16 %v329
        %v514 = vunpack.c.l.b16 %v330
        %v515 = vunpack.c.h.b16 %v330
        %v516 = vunpack.c.l.b16 %v331
        %v517 = vunpack.c.h.b16 %v331
        %v518 = vunpack.c.l.b16 %v332
        %v519 = vunpack.c.h.b16 %v332
        %v520 = vpack.c.b16 %v490, %v488
        %v521 = vpack.c.b16 %v491, %v489
        %v522 = vpack.c.b16 %v494, %v492
        %v523 = vpack.c.b16 %v495, %v493
        %v524 = vpack.c.b16 %v498, %v496
        %v525 = vpack.c.b16 %v499, %v497
        %v526 = vpack.c.b16 %v502, %v500
        %v527 = vpack.c.b16 %v503, %v501
        %v528 = vpack.c.b16 %v506, %v504
        %v529 = vpack.c.b16 %v507, %v505
        %v530 = vpack.c.b16 %v510, %v508
        %v531 = vpack.c.b16 %v511, %v509
        %v532 = vpack.c.b16 %v514, %v512
        %v533 = vpack.c.b16 %v515, %v513
        %v534 = vpack.c.b16 %v518, %v516
        %v535 = vpack.c.b16 %v519, %v517
        %552 = vmatprep.subr.bf16.mxu0 %v521
        %553 = vmatpush1.bf16.msra.mxu0 %v520
        %554 = vmatprep.subr.bf16.mxu0 %v523
        %555 = vmatpush1.bf16.msra.mxu0 %v522
        %556 = vmatprep.subr.bf16.mxu0 %v525
        %557 = vmatpush1.bf16.msra.mxu0 %v524
        %558 = vmatprep.subr.bf16.mxu0 %v527
        %559 = vmatpush1.bf16.msra.mxu0 %v526
        %560 = vmatprep.subr.bf16.mxu0 %v529
        %561 = vmatpush1.bf16.msra.mxu0 %v528
        %562 = vmatprep.subr.bf16.mxu0 %v531
        %563 = vmatpush1.bf16.msra.mxu0 %v530
        %564 = vmatprep.subr.bf16.mxu0 %v533
        %565 = vmatpush1.bf16.msra.mxu0 %v532
        %566 = vmatprep.subr.bf16.mxu0 %v535
        %567 = vmatpush1.bf16.msra.mxu0 %v534
        %568 = vmatprep.subr.bf16.mxu0 0
        %569 = vmatpush1.bf16.msra.mxu0 0
        %570 = vmatprep.subr.bf16.mxu0 0
        %571 = vmatpush1.bf16.msra.mxu0 0
        %572 = vmatprep.subr.bf16.mxu0 0
        %573 = vmatpush1.bf16.msra.mxu0 0
        %574 = vmatprep.subr.bf16.mxu0 0
        %575 = vmatpush1.bf16.msra.mxu0 0
        %576 = vmatprep.subr.bf16.mxu0 0
        %577 = vmatpush1.bf16.msra.mxu0 0
        %578 = vmatprep.subr.bf16.mxu0 0
        %579 = vmatpush1.bf16.msra.mxu0 0
        %580 = vmatprep.subr.bf16.mxu0 0
        %581 = vmatpush1.bf16.msra.mxu0 0
        %582 = vmatprep.subr.bf16.mxu0 0
        %583 = vmatpush1.bf16.msra.mxu0 0
        %584 = vmatprep.mubr.bf16.mxu0 0
        %585 = vmatmul.mubr.bf16.gmra.mrb[0].mxu0 %v294
        %v586 = vpop.f32.mrb[0].mxu0
        %v587 = vadd.f32 %v464, %v586
        %v588 = vpop.f32.mrb[0].mxu0
        %v589 = vadd.f32 %v466, %v588
        %v590 = vpop.f32.mrb[0].mxu0
        %v591 = vadd.f32 %v468, %v590
        %v592 = vpop.f32.mrb[0].mxu0
        %v593 = vadd.f32 %v470, %v592
        %594 = vdwg.mxu0
        %s595 = scalar_lea.vmem [#allocation7], 256
        %v596 = vld [vmem:[%s595] sm:$0xff]
        %v597 = vld [vmem:[%s595 + $0x8] sm:$0xff]
        %v598 = vld [vmem:[%s595 + $0x10] sm:$0xff]
        %v599 = vld [vmem:[%s595 + $0x18] sm:$0xff]
        %v600 = vld [vmem:[%s595 + $0x20] sm:$0xff]
        %v601 = vld [vmem:[%s595 + $0x28] sm:$0xff]
        %v602 = vld [vmem:[%s595 + $0x30] sm:$0xff]
        %v603 = vld [vmem:[%s595 + $0x38] sm:$0xff]
        %v604 = vld [vmem:[%s595 + $0x40] sm:$0xff]
        %v605 = vld [vmem:[%s595 + $0x48] sm:$0xff]
        %v606 = vld [vmem:[%s595 + $0x50] sm:$0xff]
        %v607 = vld [vmem:[%s595 + $0x58] sm:$0xff]
        %v608 = vld [vmem:[%s595 + $0x60] sm:$0xff]
        %v609 = vld [vmem:[%s595 + $0x68] sm:$0xff]
        %v610 = vld [vmem:[%s595 + $0x70] sm:$0xff]
        %v611 = vld [vmem:[%s595 + $0x78] sm:$0xff]
        %v628 = vunpack.c.l.b16 %v596
        %v629 = vunpack.c.h.b16 %v596
        %v630 = vunpack.c.l.b16 %v597
        %v631 = vunpack.c.h.b16 %v597
        %v632 = vunpack.c.l.b16 %v598
        %v633 = vunpack.c.h.b16 %v598
        %v634 = vunpack.c.l.b16 %v599
        %v635 = vunpack.c.h.b16 %v599
        %v636 = vunpack.c.l.b16 %v600
        %v637 = vunpack.c.h.b16 %v600
        %v638 = vunpack.c.l.b16 %v601
        %v639 = vunpack.c.h.b16 %v601
        %v640 = vunpack.c.l.b16 %v602
        %v641 = vunpack.c.h.b16 %v602
        %v642 = vunpack.c.l.b16 %v603
        %v643 = vunpack.c.h.b16 %v603
        %v644 = vunpack.c.l.b16 %v604
        %v645 = vunpack.c.h.b16 %v604
        %v646 = vunpack.c.l.b16 %v605
        %v647 = vunpack.c.h.b16 %v605
        %v648 = vunpack.c.l.b16 %v606
        %v649 = vunpack.c.h.b16 %v606
        %v650 = vunpack.c.l.b16 %v607
        %v651 = vunpack.c.h.b16 %v607
        %v652 = vunpack.c.l.b16 %v608
        %v653 = vunpack.c.h.b16 %v608
        %v654 = vunpack.c.l.b16 %v609
        %v655 = vunpack.c.h.b16 %v609
        %v656 = vunpack.c.l.b16 %v610
        %v657 = vunpack.c.h.b16 %v610
        %v658 = vunpack.c.l.b16 %v611
        %v659 = vunpack.c.h.b16 %v611
        %v660 = vpack.c.b16 %v630, %v628
        %v661 = vpack.c.b16 %v631, %v629
        %v662 = vpack.c.b16 %v634, %v632
        %v663 = vpack.c.b16 %v635, %v633
        %v664 = vpack.c.b16 %v638, %v636
        %v665 = vpack.c.b16 %v639, %v637
        %v666 = vpack.c.b16 %v642, %v640
        %v667 = vpack.c.b16 %v643, %v641
        %v668 = vpack.c.b16 %v646, %v644
        %v669 = vpack.c.b16 %v647, %v645
        %v670 = vpack.c.b16 %v650, %v648
        %v671 = vpack.c.b16 %v651, %v649
        %v672 = vpack.c.b16 %v654, %v652
        %v673 = vpack.c.b16 %v655, %v653
        %v674 = vpack.c.b16 %v658, %v656
        %v675 = vpack.c.b16 %v659, %v657
        %692 = vmatprep.subr.bf16.mxu0 %v661
        %693 = vmatpush1.bf16.msra.mxu0 %v660
        %694 = vmatprep.subr.bf16.mxu0 %v663
        %695 = vmatpush1.bf16.msra.mxu0 %v662
        %696 = vmatprep.subr.bf16.mxu0 %v665
        %697 = vmatpush1.bf16.msra.mxu0 %v664
        %698 = vmatprep.subr.bf16.mxu0 %v667
        %699 = vmatpush1.bf16.msra.mxu0 %v666
        %700 = vmatprep.subr.bf16.mxu0 %v669
        %701 = vmatpush1.bf16.msra.mxu0 %v668
        %702 = vmatprep.subr.bf16.mxu0 %v671
        %703 = vmatpush1.bf16.msra.mxu0 %v670
        %704 = vmatprep.subr.bf16.mxu0 %v673
        %705 = vmatpush1.bf16.msra.mxu0 %v672
        %706 = vmatprep.subr.bf16.mxu0 %v675
        %707 = vmatpush1.bf16.msra.mxu0 %v674
        %708 = vmatprep.subr.bf16.mxu0 0
        %709 = vmatpush1.bf16.msra.mxu0 0
        %710 = vmatprep.subr.bf16.mxu0 0
        %711 = vmatpush1.bf16.msra.mxu0 0
        %712 = vmatprep.subr.bf16.mxu0 0
        %713 = vmatpush1.bf16.msra.mxu0 0
        %714 = vmatprep.subr.bf16.mxu0 0
        %715 = vmatpush1.bf16.msra.mxu0 0
        %716 = vmatprep.subr.bf16.mxu0 0
        %717 = vmatpush1.bf16.msra.mxu0 0
        %718 = vmatprep.subr.bf16.mxu0 0
        %719 = vmatpush1.bf16.msra.mxu0 0
        %720 = vmatprep.subr.bf16.mxu0 0
        %721 = vmatpush1.bf16.msra.mxu0 0
        %722 = vmatprep.subr.bf16.mxu0 0
        %723 = vmatpush1.bf16.msra.mxu0 0
        %724 = vmatprep.mubr.bf16.mxu0 0
        %725 = vmatmul.mubr.bf16.gmra.mrb[0].mxu0 %v315
        %v726 = vpop.f32.mrb[0].mxu0
        %v727 = vadd.f32 0.0, %v726
        %v728 = vpop.f32.mrb[0].mxu0
        %v729 = vadd.f32 0.0, %v728
        %v730 = vpop.f32.mrb[0].mxu0
        %v731 = vadd.f32 0.0, %v730
        %v732 = vpop.f32.mrb[0].mxu0
        %v733 = vadd.f32 0.0, %v732
        %734 = vdwg.mxu0
        %v735 = vadd.f32 %v587, %v727
        %v736 = vadd.f32 %v589, %v729
        %v737 = vadd.f32 %v591, %v731
        %v738 = vadd.f32 %v593, %v733
        %v739 = vld [vmem:[%s3] sm:$0x3]
        %v741 = vlaneseq
        %v742 = vshrl.u32 %v741, 7
        %v743 = vsub.s32 0, %v742
        %v744 = vrot.slane %v739, %v743
        %v745 = vlaneseq
        %v746 = vshrl.u32 %v745, 7
        %v747 = vsub.s32 1, %v746
        %v748 = vrot.slane %v739, %v747
        %v751 = vadd.f32 %v735, %v744
        %v752 = vadd.f32 %v736, %v748
        %v753 = vadd.f32 %v737, %v744
        %v754 = vadd.f32 %v738, %v748
        %v755 = vsub.f32 0.0, %v751
        %v756 = vsub.f32 0.0, %v753
        %v757 = vmul.f32 %v755, 1.442695
        %v758 = vpow.pop %v757
        %v759 = vmul.f32 %v756, 1.442695
        %v760 = vpow.pop %v759
        %v761 = vadd.f32 %v758, 1.0
        %v762 = vadd.f32 %v760, 1.0
        %v763 = vrcp.pop %v761
        %v764 = vrcp.pop %v762
        %v765 = vsub.f32 %v752, %v291
        %v766 = vsub.f32 %v754, %v292
        %v767 = vmul.f32 %v763, %v765
        %v768 = vmul.f32 %v764, %v766
        %v769 = vadd.f32 %v291, %v767
        %v770 = vadd.f32 %v292, %v768
        %771 = vst [vmem:[%s287] sm:$0xff] %v769
        %772 = vst [vmem:[%s287 + $0x8] sm:$0xff] %v770
        %s773 = sand.u32 %s144, 1
        %s774 = scalar_lea.sflag [#allocation4], %s773
        %s775 = sand.u32 %s144, 1
        %s776 = smul.addr %s775, 16
        %s777 = scalar_lea.vmem [#allocation8], %s776
        // Predicated region
        $region49: #{tpu_custom_call.1} parent=35 // pred_check
          %p778 = pneg %p154
        $region50: #{tpu_custom_call.1} parent=35 // pred_check_branch
          %780 = sbr.rel (%p778) target = $region52
        $region51: #{tpu_custom_call.1} parent=35 // pred_region
          %s781 = smul.u32 2, %s29
          %s783 = ssub.s32 256, 256
          %784 = vsyncadd %s774, %s783
          %s785 = smul.addr %s28, 2
          %s786 = sadd.s32 %s781, %s785
          %s787 = smul.addr %s786, 128
          %s788 = scalar_lea.hbm %s4, %s787
          %s789 = sshll.u32 %s777, 4
          %s790 = int_to_ptr.vmem [resolvable:$true] %s789
          %795 = dma.vmem_to_hbm [thread:$0]  %s790, 256, %s788, %s774, 128, 128, 8
        $region52: #{tpu_custom_call.1} parent=35 // pred_fallthru
          _
      $region36: #{tpu_custom_call.1} parent=5 // pred_fallthru
        _
      %p796 = scmp.le.s32.totalorder 2, %s19
      // Predicated region
      $region53: #{tpu_custom_call.1} parent=5 // pred_check
        %p797 = pneg %p796
      $region54: #{tpu_custom_call.1} parent=5 // pred_check_branch
        %799 = sbr.rel (%p797) target = $region56
      $region55: #{tpu_custom_call.1} parent=5 // pred_region
        %s800 = ssub.s32 %s19, 2
        // Predicated region
        $region57: #{tpu_custom_call.1} parent=55 // pred_check
          %p801 = pneg %p160
        $region58: #{tpu_custom_call.1} parent=55 // pred_check_branch
          %803 = sbr.rel (%p801) target = $region60
        $region59: #{tpu_custom_call.1} parent=55 // pred_region
          %s804 = sand.u32 %s145, 1
          %s805 = scalar_lea.sflag [#allocation4], %s804
          %s806 = sand.u32 %s145, 1
          %s807 = smul.addr %s806, 16
          %s808 = scalar_lea.vmem [#allocation8], %s807
          %809 = dma.done %s805, 256
        $region60: #{tpu_custom_call.1} parent=55 // pred_fallthru
          _
      $region56: #{tpu_custom_call.1} parent=5 // pred_fallthru
        _
    $region6: #{tpu_custom_call.1} parent=1 // loop_footer
      %s23 = sadd.s32 1, %s19
    $region7: #{tpu_custom_call.1} parent=1 // loop_footer_branch
      %18 = sbr.rel target = $region3
    $region8: #{tpu_custom_call.1} parent=1 // loop_exit
      _
    %810 = vsyncpa [#allocation3], 1
    %s811 = scalar_lea.sflag [#allocation3], 1
    %812 = vsyncpa %s811, 1
    %813 = vsyncpa [#allocation6], 1
    %s814 = scalar_lea.sflag [#allocation6], 1
    %815 = vsyncpa %s814, 1
    %816 = vsyncpa [#allocation4], 1
    %s817 = scalar_lea.sflag [#allocation4], 1
    %818 = vsyncpa %s817, 1

</llo_original>
